<compile_context>
chip_gen: v5e
topology: v5e:2x2
jax: 0.10.0
libtpu: 0.0.40
codegen_flags: <defaults>
</compile_context>

<pallas_src>
import functools
import math

import numpy as np
import jax
import jax.numpy as jnp
from jax.experimental import pallas as pl
from jax.experimental.pallas import tpu as pltpu


# ----------------------------------------------------------------------------
# helpers
# ----------------------------------------------------------------------------
def _round_up(x, m):
    return ((x + m - 1) // m) * m


def _next_pow2(n):
    return 1 << (max(int(n), 1) - 1).bit_length()


def _bucket_rows(n, tile):
    """Pad a data-dependent row count to a small set of static bucket sizes
    (power of two below one tile, multiple of `tile` above), so each distinct
    graph size does not trigger a new Mosaic compile.  Returns (padded, tile)."""
    n = max(int(n), 1)
    if n <= tile:
        pad = max(8, _round_up(_next_pow2(n), 8))
        return pad, pad
    return _round_up(n, tile), tile


# ----------------------------------------------------------------------------
# Pallas kernels
# ----------------------------------------------------------------------------
def edge_feat_kernel(scal_ref, offset_ref, out_ref, *, coeff, num_g):
    """Fused GaussianSmearing RBF + lattice-angle cos/sin features.

    scal_ref   : (T, 8)   packed [dist, ip0, ip1, ip2, pad x4]
    offset_ref : (1, G)   RBF centers
    out_ref    : (T, OUT_W) with OUT_W = round_up(G + 6, 128); lanes >= G+6 zero
    """
    s = scal_ref[...]                               # (T, 8)
    d = s[:, 0:1]                                   # (T, 1)
    ip = jnp.clip(s[:, 1:4], -1.0, 1.0)             # (T, 3)

    off = offset_ref[...]                           # (1, G)
    diff = d - off                                  # (T, G)
    out_ref[:, 0:num_g] = jnp.exp(coeff * diff * diff)   # GaussianSmearing

    # angles = pi - arccos(ip)  =>  cos = -ip ; sin = sqrt(1 - ip^2)
    cos_a = -ip
    sin_a = jnp.sqrt(jnp.maximum(1.0 - ip * ip, 0.0))
    # torch.nan_to_num(..., nan=0, posinf=0, neginf=0) equivalent
    cos_a = jnp.where(jnp.isfinite(cos_a), cos_a, 0.0)
    sin_a = jnp.where(jnp.isfinite(sin_a), sin_a, 0.0)

    out_ref[:, num_g:num_g + 3] = cos_a
    out_ref[:, num_g + 3:num_g + 6] = sin_a
    pad_w = out_ref.shape[1] - (num_g + 6)
    if pad_w > 0:
        out_ref[:, num_g + 6:] = jnp.zeros((s.shape[0], pad_w), jnp.float32)


def node_embed_kernel(atom_emb_ref, frac_ref, w_ref, out_ref, *, c):
    """atom_type_embedding + frac_coords @ W written into the l=0 coefficient
    of the flattened SO3 embedding.

    atom_emb_ref : (T, C)       gathered atom-type embeddings
    frac_ref     : (T, 3)       fractional coordinates
    w_ref        : (3, C)       frac_coords_embedding weight (transposed)
    out_ref      : (T, L2 * C)  flattened SO3 embedding; columns >= C are zero
    """
    f = frac_ref[...]                               # (T, 3)
    w = w_ref[...]                                  # (3, C)
    # K=3 matmul as three VPU broadcast-FMAs (the MXU would be ~1% utilized).
    emb = (atom_emb_ref[...]
           + f[:, 0:1] * w[0:1, :]
           + f[:, 1:2] * w[1:2, :]
           + f[:, 2:3] * w[2:3, :])                 # (T, C)
    out_ref[:, 0:c] = emb
    pad_w = out_ref.shape[1] - c
    if pad_w > 0:
        out_ref[:, c:] = jnp.zeros((emb.shape[0], pad_w), jnp.float32)


# ----------------------------------------------------------------------------
# Wrappers around pallas_call
# ----------------------------------------------------------------------------
_COMPILER_PARAMS = pltpu.CompilerParams(
    dimension_semantics=("parallel",),              # shards row tiles across TCs (v7x)
    vmem_limit_bytes=32 * 1024 * 1024,              # safe on v5e/v6e/v7x
)


def edge_features(edge_distance, inner_prod, rbf_offset, coeff, *, e_tile=4096):
    e = edge_distance.shape[0]
    g = rbf_offset.shape[0]
    out_w = _round_up(g + 6, 128)                   # lane-dense padded output
    e_pad, tile = _bucket_rows(e, e_tile)

    # Pack dist + inner products into one (E, 8) slab: one aligned DMA per tile.
    scal = jnp.concatenate(
        [edge_distance.reshape(e, 1).astype(jnp.float32),
         inner_prod.astype(jnp.float32),
         jnp.zeros((e, 4), jnp.float32)], axis=1)
    scal = jnp.pad(scal, ((0, e_pad - e), (0, 0)))

    out = pl.pallas_call(
        functools.partial(edge_feat_kernel, coeff=float(coeff), num_g=g),
        out_shape=jax.ShapeDtypeStruct((e_pad, out_w), jnp.float32),
        grid=(e_pad // tile,),
        in_specs=[
            pl.BlockSpec((tile, 8), lambda i: (i, 0)),
            pl.BlockSpec((1, g), lambda i: (0, 0)),
        ],
        out_specs=pl.BlockSpec((tile, out_w), lambda i: (i, 0)),
        compiler_params=_COMPILER_PARAMS,
    )(scal, rbf_offset.reshape(1, g).astype(jnp.float32))
    return out[:e, : g + 6]


def node_embedding(atom_emb_gathered, frac_coords, w_frac, l2, *, n_tile=1024):
    n, c = atom_emb_gathered.shape
    out_w = l2 * c
    n_pad, tile = _bucket_rows(n, n_tile)

    emb = jnp.pad(atom_emb_gathered.astype(jnp.float32), ((0, n_pad - n), (0, 0)))
    frac = jnp.pad(frac_coords.astype(jnp.float32), ((0, n_pad - n), (0, 0)))

    out = pl.pallas_call(
        functools.partial(node_embed_kernel, c=c),
        out_shape=jax.ShapeDtypeStruct((n_pad, out_w), jnp.float32),
        grid=(n_pad // tile,),
        in_specs=[
            pl.BlockSpec((tile, c), lambda i: (i, 0)),
            pl.BlockSpec((tile, 3), lambda i: (i, 0)),
            pl.BlockSpec((3, c), lambda i: (0, 0)),
        ],
        out_specs=pl.BlockSpec((tile, out_w), lambda i: (i, 0)),
        compiler_params=_COMPILER_PARAMS,
    )(emb, frac, w_frac.astype(jnp.float32))
    return out[:n]                                   # (N, L2*C) == (N, d_model)


# ----------------------------------------------------------------------------
# Graph generation (host-side, data-dependent edge count) — vectorized numpy
# ----------------------------------------------------------------------------
def generate_graph_np(pos, batch_idx, cutoff):
    # TODO(synk): radius_graph_pbc / PBC image expansion not provided; this is the
    # non-PBC radius-graph branch of `generate_graph`, vectorized in numpy.
    pos = np.asarray(pos, dtype=np.float32)
    b = np.asarray(batch_idx)
    diff = pos[None, :, :] - pos[:, None, :]         # diff[i, j] = pos[j] - pos[i]
    dist = np.linalg.norm(diff, axis=-1)
    mask = (b[:, None] == b[None, :]) & (dist <= cutoff)
    np.fill_diagonal(mask, False)
    dst_i, src_j = np.nonzero(mask)                  # i = target, j = source
    edge_index = np.stack([src_j.astype(np.int32), dst_i.astype(np.int32)])
    dvec = diff[dst_i, src_j].astype(np.float32)     # pos[j] - pos[i]
    edist = dist[dst_i, src_j].astype(np.float32)
    return edge_index, edist, dvec


# ----------------------------------------------------------------------------
# Forward pass
# ----------------------------------------------------------------------------
def equiformer_encoder_forward(
    params,
    atom_types,
    frac_coords,
    cell,
    batch_idx,
    num_atoms,
    token_idx,
    edge_index,
    edge_distance,
    edge_distance_vec,
    *,
    sphere_channels,
    lmax,
    rbf_coeff,
):
    l2 = (lmax + 1) ** 2
    num_g = params["rbf_offset"].shape[0]
    e = edge_index.shape[1]

    # --- edge scalar features (RBF + lattice angles) ---
    if e > 0:
        edge2graph = batch_idx[edge_index[0]]
        edge_cell_vec = cell[edge2graph]                                    # (E,3,3)
        edge_cell_vec = edge_cell_vec / jnp.linalg.norm(
            edge_cell_vec, axis=-1, keepdims=True
        )
        # No eps, matching the reference: self-edges are excluded so dist > 0;
        # any NaN from degenerate geometry is zeroed by the in-kernel guards
        # (torch.nan_to_num equivalent).
        edge_displ = edge_distance_vec / edge_distance[:, None]            # (E,3)
        inner_prod = jnp.einsum("eij,ej->ei", edge_cell_vec, edge_displ)   # (E,3)
        edge_feat = edge_features(
            edge_distance, inner_prod, params["rbf_offset"], rbf_coeff
        )
    else:
        edge_feat = jnp.zeros((0, num_g + 6), jnp.float32)

    # --- node embedding: atom type embedding + frac-coords linear ---
    atom_emb_gathered = params["atom_type_emb"][atom_types]                # (N,C)
    x_flat = node_embedding(
        atom_emb_gathered, frac_coords, params["w_frac"], l2
    )                                                                      # (N, L2*C)

    # TODO(synk): init_edge_rot_mat / SO3_Rotation Wigner matrices, EdgeDegreeEmbedding,
    # the 12 TransBlockV2 layers (SO(2) attention + S2-activation FFN) and the final
    # rms_norm_sh normalization have no provided source; they are not reproduced here.

    out = {
        "x": x_flat,                     # == x.embedding.view(-1, d_model)
        "num_atoms": num_atoms,
        "batch": batch_idx,
        "token_idx": token_idx,
    }
    return out, edge_feat


# ----------------------------------------------------------------------------
# Main
# ----------------------------------------------------------------------------
if __name__ == "__main__":
    # small but shape-consistent hyperparameters
    B = 2                    # crystals in batch
    ATOMS_PER = 4
    N = B * ATOMS_PER        # total atoms
    C = 32                   # sphere_channels
    LMAX = 2                 # lmax_list = [2]  -> (lmax+1)^2 = 9
    L2 = (LMAX + 1) ** 2
    G = 64                   # num_distance_basis
    CUTOFF = 5.0
    MAX_NUM_ELEMENTS = 90

    key = jax.random.PRNGKey(0)
    k_atoms, k_frac, k_cell, k_emb, k_wfrac = jax.random.split(key, 5)

    atom_types = jax.random.randint(k_atoms, (N,), 1, MAX_NUM_ELEMENTS)
    frac_coords = jax.random.uniform(k_frac, (N, 3), dtype=jnp.float32)
    cell = (
        jnp.eye(3, dtype=jnp.float32)[None, :, :] * 3.0
        + 0.1 * jax.random.normal(k_cell, (B, 3, 3), dtype=jnp.float32)
    )
    batch_idx = jnp.repeat(jnp.arange(B, dtype=jnp.int32), ATOMS_PER)
    num_atoms = jnp.full((B,), ATOMS_PER, dtype=jnp.int32)
    token_idx = jnp.arange(N, dtype=jnp.int32)
    pos = jnp.einsum("ni,nij->nj", frac_coords, cell[batch_idx])        # cartesian

    # deterministic parameter init (matches shapes / init statistics of __init__)
    atom_type_emb = jax.random.normal(k_emb, (MAX_NUM_ELEMENTS, C), dtype=jnp.float32)
    w_frac = jax.random.normal(k_wfrac, (3, C), dtype=jnp.float32) * (1.0 / math.sqrt(3.0))
    rbf_offset = jnp.linspace(0.0, CUTOFF, G, dtype=jnp.float32)
    delta = float(rbf_offset[1] - rbf_offset[0])
    rbf_coeff = -0.5 / (2.0 * delta) ** 2                               # basis_width_scalar=2.0
    params = {"atom_type_emb": atom_type_emb, "w_frac": w_frac, "rbf_offset": rbf_offset}

    # graph generation (host side, data-dependent edge count)
    edge_index_np, edge_dist_np, edge_dvec_np = generate_graph_np(
        np.asarray(pos), np.asarray(batch_idx), CUTOFF
    )
    edge_index = jnp.asarray(edge_index_np)
    edge_distance = jnp.asarray(edge_dist_np)
    edge_distance_vec = jnp.asarray(edge_dvec_np)

    out, edge_feat = equiformer_encoder_forward(
        params,
        atom_types,
        frac_coords,
        cell,
        batch_idx,
        num_atoms,
        token_idx,
        edge_index,
        edge_distance,
        edge_distance_vec,
        sphere_channels=C,
        lmax=LMAX,
        rbf_coeff=rbf_coeff,
    )

    jax.block_until_ready((out, edge_feat))
    assert out["x"].shape == (N, C * L2)
    assert edge_feat.shape == (edge_index.shape[1], G + 6)
    print("KERNEL_OK")
</pallas_src>

<mosaic_0001>
module attributes {stable_mosaic.version = 11 : i64} {
  func.func @edge_feat_kernel(%arg0: i32, %arg1: memref<32x8xf32, #tpu.memory_space<vmem>>, %arg2: memref<1x64xf32, #tpu.memory_space<vmem>>, %arg3: memref<32x128xf32, #tpu.memory_space<vmem>>) attributes {dimension_semantics = [#tpu.dimension_semantics<parallel>], iteration_bounds = array<i64: 1>, scalar_prefetch = 0 : i64, scratch_operands = 0 : i64, tpu.core_type = #tpu.core_type<tc>, window_params = [{transform_indices = @transform_0, window_bounds = array<i64: 32, 8>}, {pipeline_mode = #tpu.pipeline_mode<synchronous>, transform_indices = @transform_1, window_bounds = array<i64: 1, 64>}, {transform_indices = @transform_2, window_bounds = array<i64: 32, 128>}]} {
    %c0 = arith.constant 0 : index
    %c0_0 = arith.constant 0 : index
    %0 = vector.load %arg1[%c0, %c0_0] : memref<32x8xf32, #tpu.memory_space<vmem>>, vector<32x8xf32>
    %1 = vector.extract_strided_slice %0 {offsets = [0, 0], sizes = [32, 1], strides = [1, 1]} : vector<32x8xf32> to vector<32x1xf32>
    %2 = vector.extract_strided_slice %0 {offsets = [0, 1], sizes = [32, 3], strides = [1, 1]} : vector<32x8xf32> to vector<32x3xf32>
    %cst = arith.constant -1.000000e+00 : f32
    %cst_1 = arith.constant 1.000000e+00 : f32
    %3 = vector.broadcast %cst : f32 to vector<32x3xf32>
    %4 = arith.maximumf %3, %2 : vector<32x3xf32>
    %5 = vector.broadcast %cst_1 : f32 to vector<32x3xf32>
    %6 = arith.minimumf %5, %4 : vector<32x3xf32>
    %c0_2 = arith.constant 0 : index
    %c0_3 = arith.constant 0 : index
    %7 = vector.load %arg2[%c0_2, %c0_3] : memref<1x64xf32, #tpu.memory_space<vmem>>, vector<1x64xf32>
    %8 = vector.broadcast %1 : vector<32x1xf32> to vector<32x64xf32>
    %9 = vector.broadcast %7 : vector<1x64xf32> to vector<32x64xf32>
    %10 = arith.subf %8, %9 : vector<32x64xf32>
    %cst_4 = arith.constant -1.984500e+01 : f32
    %11 = vector.broadcast %cst_4 : f32 to vector<32x64xf32>
    %12 = arith.mulf %11, %10 : vector<32x64xf32>
    %13 = arith.mulf %12, %10 : vector<32x64xf32>
    %14 = math.exp %13 : vector<32x64xf32>
    %c0_5 = arith.constant 0 : index
    %c0_6 = arith.constant 0 : index
    %15 = vector.load %arg3[%c0_5, %c0_6] : memref<32x128xf32, #tpu.memory_space<vmem>>, vector<32x64xf32>
    tpu.vector_store %arg3[%c0_5, %c0_6], %14 {strides = array<i32>} : memref<32x128xf32, #tpu.memory_space<vmem>>, vector<32x64xf32>,
    %cst_7 = arith.constant 0.000000e+00 : f32
    %16 = vector.broadcast %cst_7 : f32 to vector<32x3xf32>
    %17 = arith.subf %16, %6 : vector<32x3xf32>
    %18 = arith.mulf %6, %6 : vector<32x3xf32>
    %cst_8 = arith.constant 1.000000e+00 : f32
    %19 = vector.broadcast %cst_8 : f32 to vector<32x3xf32>
    %20 = arith.subf %19, %18 : vector<32x3xf32>
    %cst_9 = arith.constant 0.000000e+00 : f32
    %21 = vector.broadcast %cst_9 : f32 to vector<32x3xf32>
    %22 = arith.maximumf %20, %21 : vector<32x3xf32>
    %23 = math.sqrt %22 : vector<32x3xf32>
    %24 = tpu.weird %17 : vector<32x3xf32> -> vector<32x3xi1>
    %cst_10 = arith.constant dense<true> : vector<32x3xi1>
    %25 = arith.xori %24, %cst_10 : vector<32x3xi1>
    %cst_11 = arith.constant 0.000000e+00 : f32
    %26 = vector.broadcast %cst_11 : f32 to vector<32x3xf32>
    %27 = arith.select %25, %17, %26 : vector<32x3xi1>, vector<32x3xf32>
    %28 = tpu.weird %23 : vector<32x3xf32> -> vector<32x3xi1>
    %cst_12 = arith.constant dense<true> : vector<32x3xi1>
    %29 = arith.xori %28, %cst_12 : vector<32x3xi1>
    %cst_13 = arith.constant 0.000000e+00 : f32
    %30 = vector.broadcast %cst_13 : f32 to vector<32x3xf32>
    %31 = arith.select %29, %23, %30 : vector<32x3xi1>, vector<32x3xf32>
    %c0_14 = arith.constant 0 : index
    %c64 = arith.constant 64 : index
    %32 = vector.load %arg3[%c0_14, %c64] : memref<32x128xf32, #tpu.memory_space<vmem>>, vector<32x3xf32>
    tpu.vector_store %arg3[%c0_14, %c64], %27 {strides = array<i32>} : memref<32x128xf32, #tpu.memory_space<vmem>>, vector<32x3xf32>,
    %c0_15 = arith.constant 0 : index
    %c67 = arith.constant 67 : index
    %33 = vector.load %arg3[%c0_15, %c67] : memref<32x128xf32, #tpu.memory_space<vmem>>, vector<32x3xf32>
    tpu.vector_store %arg3[%c0_15, %c67], %31 {strides = array<i32>} : memref<32x128xf32, #tpu.memory_space<vmem>>, vector<32x3xf32>,
    %cst_16 = arith.constant 0.000000e+00 : f32
    %34 = vector.broadcast %cst_16 : f32 to vector<32x58xf32>
    %c0_17 = arith.constant 0 : index
    %c70 = arith.constant 70 : index
    %35 = vector.load %arg3[%c0_17, %c70] : memref<32x128xf32, #tpu.memory_space<vmem>>, vector<32x58xf32>
    tpu.vector_store %arg3[%c0_17, %c70], %34 {strides = array<i32>} : memref<32x128xf32, #tpu.memory_space<vmem>>, vector<32x58xf32>,
    return
  }
  func.func @transform_0(%arg0: i32) -> (i32, i32) {
    %c0_i32 = arith.constant 0 : i32
    %c0_i32_0 = arith.constant 0 : i32
    return %arg0, %c0_i32 : i32, i32
  }
  func.func @transform_1(%arg0: i32) -> (i32, i32) {
    %c0_i32 = arith.constant 0 : i32
    %c0_i32_0 = arith.constant 0 : i32
    %c0_i32_1 = arith.constant 0 : i32
    return %c0_i32, %c0_i32_0 : i32, i32
  }
  func.func @transform_2(%arg0: i32) -> (i32, i32) {
    %c0_i32 = arith.constant 0 : i32
    %c0_i32_0 = arith.constant 0 : i32
    return %arg0, %c0_i32 : i32, i32
  }
}

</mosaic_0001>

<llo_original>
// kernel: tpu_custom_call.1
$region0: #{tpu_custom_call.1}
  #allocation0 [shape = 'u32[]', space=smem, size = 0x4, offset = 0x4, fixed_abs, tag = 'smem constant byte address 0x4 - core index']
  #allocation1 [shape = 'u32[72,128]{1,0:T(1,128)}', space=vmem, size = 0x9000, scoped, tag = 'internal scratch']
  %s0 = inlined_call_operand.vmem [shape: f32[32,8], index: 0, kind: input, shape index: {}]
  %s1 = inlined_call_operand.vmem [shape: f32[1,64], index: 1, kind: input, shape index: {}]
  %s2 = inlined_call_operand.hbm [shape: f32[32,128], index: 2, kind: output, shape index: {}]
  %s3 = sld [smem:[#allocation0]]
  $region18: #{tpu_custom_call.1} parent=0
    _
  %s5 = ssub.s32 1, %s3
  %s6 = scalar_select 0, %s5, %s3
  $region1: #{tpu_custom_call.1} parent=0
    #allocation2 [shape = 'u8[16384]{0}', space=vmem, size = 0x4000, scoped, tag = 'output window, operand 0, single buffered']
    #allocation3 [shape = 's32[1]{0}', space=sflag, size = 0x4, scoped, tag = 'scoped memory for tpu_custom_call.1']
    %7 = vsyncpa [#allocation3], 0
    // Predicated region
    $region2: #{tpu_custom_call.1} parent=1 // pred_check
      _
    $region3: #{tpu_custom_call.1} parent=1 // pred_check_branch
      %9 = sbr.rel (0) target = $region5
    $region4: #{tpu_custom_call.1} parent=1 // pred_region
      _
    $region5: #{tpu_custom_call.1} parent=1 // pred_fallthru
      _
    // Predicated region
    $region6: #{tpu_custom_call.1} parent=1 // pred_check
      _
    $region7: #{tpu_custom_call.1} parent=1 // pred_check_branch
      %11 = sbr.rel (0) target = $region9
    $region8: #{tpu_custom_call.1} parent=1 // pred_region
      _
    $region9: #{tpu_custom_call.1} parent=1 // pred_fallthru
      _
    %v12 = vld [vmem:[%s0] sm:$0xff]
    %v13 = vld [vmem:[%s0 + $0x8] sm:$0xff]
    %v14 = vld [vmem:[%s0 + $0x10] sm:$0xff]
    %v15 = vld [vmem:[%s0 + $0x18] sm:$0xff]
    %v16 = vmax.f32 %v12, -1.0
    %v17 = vmax.f32 %v13, -1.0
    %v18 = vmax.f32 %v14, -1.0
    %v19 = vmax.f32 %v15, -1.0
    %v20 = vmin.f32 %v16, 1.0
    %v21 = vmin.f32 %v17, 1.0
    %v22 = vmin.f32 %v18, 1.0
    %v23 = vmin.f32 %v19, 1.0
    %v24 = vld [vmem:[%s1] sm:$0x1]
    %26 = vset.pattern.permute.xlu0 0
    %27 = vperm.xlu0 %26, %v12
    %v28 = vpop.permute.xlu0 %27
    %31 = vset.pattern.permute.xlu0 0
    %32 = vperm.xlu0 %31, %v13
    %v33 = vpop.permute.xlu0 %32
    %36 = vset.pattern.permute.xlu0 0
    %37 = vperm.xlu0 %36, %v14
    %v38 = vpop.permute.xlu0 %37
    %41 = vset.pattern.permute.xlu0 0
    %42 = vperm.xlu0 %41, %v15
    %v43 = vpop.permute.xlu0 %42
    %v46 = vperm.slane %v24, 0
    %v48 = vsub.f32 %v28, %v46
    %v49 = vsub.f32 %v33, %v46
    %v50 = vsub.f32 %v38, %v46
    %v51 = vsub.f32 %v43, %v46
    %v52 = vmul.f32 %v48, -19.845
    %v53 = vmul.f32 %v49, -19.845
    %v54 = vmul.f32 %v50, -19.845
    %v55 = vmul.f32 %v51, -19.845
    %v56 = vmul.f32 %v52, %v48
    %v57 = vmul.f32 %v53, %v49
    %v58 = vmul.f32 %v54, %v50
    %v59 = vmul.f32 %v55, %v51
    %v60 = vmul.f32 %v56, 1.442695
    %v61 = vpow.pop %v60
    %v62 = vmul.f32 %v57, 1.442695
    %v63 = vpow.pop %v62
    %v64 = vmul.f32 %v58, 1.442695
    %v65 = vpow.pop %v64
    %v66 = vmul.f32 %v59, 1.442695
    %v67 = vpow.pop %v66
    %vm68 = vcmask 523264
    %69 = vst.msk [vmem:[#allocation2] sm:$0xff] %vm68, %v61
    %70 = vst.msk [vmem:[#allocation2 + $0x8] sm:$0xff] %vm68, %v63
    %71 = vst.msk [vmem:[#allocation2 + $0x10] sm:$0xff] %vm68, %v65
    %72 = vst.msk [vmem:[#allocation2 + $0x18] sm:$0xff] %vm68, %v67
    %v73 = vsub.f32 0.0, %v20
    %v74 = vsub.f32 0.0, %v21
    %v75 = vsub.f32 0.0, %v22
    %v76 = vsub.f32 0.0, %v23
    %v77 = vmul.f32 %v20, %v20
    %v78 = vmul.f32 %v21, %v21
    %v79 = vmul.f32 %v22, %v22
    %v80 = vmul.f32 %v23, %v23
    %v81 = vsub.f32 1.0, %v77
    %v82 = vsub.f32 1.0, %v78
    %v83 = vsub.f32 1.0, %v79
    %v84 = vsub.f32 1.0, %v80
    %v85 = vmax.f32 %v81, 0.0
    %v86 = vmax.f32 %v82, 0.0
    %v87 = vmax.f32 %v83, 0.0
    %v88 = vmax.f32 %v84, 0.0
    %v89 = vrsqrt.pop %v85
    %v90 = vmul.f32 %v89, %v85
    %v91 = vmul.f32 %v90, %v89
    %v92 = vmul.f32 0.5, %v91
    %v93 = vsub.f32 1.5, %v92
    %v94 = vmul.f32 %v89, %v93
    %v95 = vmul.f32 %v85, %v94
    %vm96 = vcmp.eq.f32.partialorder %v85, inf
    %v97 = vsel %vm96, %v85, %v95
    %vm98 = vcmp.eq.f32.partialorder %v85, 0.0
    %v99 = vand.u32 %v85, 2147483648
    %v100 = vsel %vm98, %v99, %v97
    %v101 = vrsqrt.pop %v86
    %v102 = vmul.f32 %v101, %v86
    %v103 = vmul.f32 %v102, %v101
    %v104 = vmul.f32 0.5, %v103
    %v105 = vsub.f32 1.5, %v104
    %v106 = vmul.f32 %v101, %v105
    %v107 = vmul.f32 %v86, %v106
    %vm108 = vcmp.eq.f32.partialorder %v86, inf
    %v109 = vsel %vm108, %v86, %v107
    %vm110 = vcmp.eq.f32.partialorder %v86, 0.0
    %v111 = vand.u32 %v86, 2147483648
    %v112 = vsel %vm110, %v111, %v109
    %v113 = vrsqrt.pop %v87
    %v114 = vmul.f32 %v113, %v87
    %v115 = vmul.f32 %v114, %v113
    %v116 = vmul.f32 0.5, %v115
    %v117 = vsub.f32 1.5, %v116
    %v118 = vmul.f32 %v113, %v117
    %v119 = vmul.f32 %v87, %v118
    %vm120 = vcmp.eq.f32.partialorder %v87, inf
    %v121 = vsel %vm120, %v87, %v119
    %vm122 = vcmp.eq.f32.partialorder %v87, 0.0
    %v123 = vand.u32 %v87, 2147483648
    %v124 = vsel %vm122, %v123, %v121
    %v125 = vrsqrt.pop %v88
    %v126 = vmul.f32 %v125, %v88
    %v127 = vmul.f32 %v126, %v125
    %v128 = vmul.f32 0.5, %v127
    %v129 = vsub.f32 1.5, %v128
    %v130 = vmul.f32 %v125, %v129
    %v131 = vmul.f32 %v88, %v130
    %vm132 = vcmp.eq.f32.partialorder %v88, inf
    %v133 = vsel %vm132, %v88, %v131
    %vm134 = vcmp.eq.f32.partialorder %v88, 0.0
    %v135 = vand.u32 %v88, 2147483648
    %v136 = vsel %vm134, %v135, %v133
    %vm137 = vweird.f32 %v73
    %vm138 = vweird.f32 %v74
    %vm139 = vweird.f32 %v75
    %vm140 = vweird.f32 %v76
    %vm141 = vmxor %vm137, 1
    %vm142 = vmxor %vm138, 1
    %vm143 = vmxor %vm139, 1
    %vm144 = vmxor %vm140, 1
    %v145 = vsel %vm141, %v73, 0.0
    %v146 = vsel %vm142, %v74, 0.0
    %v147 = vsel %vm143, %v75, 0.0
    %v148 = vsel %vm144, %v76, 0.0
    %vm149 = vweird.f32 %v100
    %vm150 = vweird.f32 %v112
    %vm151 = vweird.f32 %v124
    %vm152 = vweird.f32 %v136
    %vm153 = vmxor %vm149, 1
    %vm154 = vmxor %vm150, 1
    %vm155 = vmxor %vm151, 1
    %vm156 = vmxor %vm152, 1
    %v157 = vsel %vm153, %v100, 0.0
    %v158 = vsel %vm154, %v112, 0.0
    %v159 = vsel %vm155, %v124, 0.0
    %v160 = vsel %vm156, %v136, 0.0
    %165 = vrot.lane.b32.xlu0 %v145, 63
    %v166 = vpop.permute.xlu0 %165
    %167 = vrot.lane.b32.xlu0 %v146, 63
    %v168 = vpop.permute.xlu0 %167
    %169 = vrot.lane.b32.xlu0 %v147, 63
    %v170 = vpop.permute.xlu0 %169
    %171 = vrot.lane.b32.xlu0 %v148, 63
    %v172 = vpop.permute.xlu0 %171
    %vm177 = vcmask 548352
    %178 = vst.msk [vmem:[#allocation2] sm:$0xff] %vm177, %v166
    %179 = vst.msk [vmem:[#allocation2 + $0x8] sm:$0xff] %vm177, %v168
    %180 = vst.msk [vmem:[#allocation2 + $0x10] sm:$0xff] %vm177, %v170
    %181 = vst.msk [vmem:[#allocation2 + $0x18] sm:$0xff] %vm177, %v172
    %186 = vrot.lane.b32.xlu0 %v157, 66
    %v187 = vpop.permute.xlu0 %186
    %188 = vrot.lane.b32.xlu0 %v158, 66
    %v189 = vpop.permute.xlu0 %188
    %190 = vrot.lane.b32.xlu0 %v159, 66
    %v191 = vpop.permute.xlu0 %190
    %192 = vrot.lane.b32.xlu0 %v160, 66
    %v193 = vpop.permute.xlu0 %192
    %vm198 = vcmask 572952
    %199 = vst.msk [vmem:[#allocation2] sm:$0xff] %vm198, %v187
    %200 = vst.msk [vmem:[#allocation2 + $0x8] sm:$0xff] %vm198, %v189
    %201 = vst.msk [vmem:[#allocation2 + $0x10] sm:$0xff] %vm198, %v191
    %202 = vst.msk [vmem:[#allocation2 + $0x18] sm:$0xff] %vm198, %v193
    %vm203 = vcmask 1048112
    %204 = vst.msk [vmem:[#allocation2] sm:$0xff] %vm203, 0.0
    %205 = vst.msk [vmem:[#allocation2 + $0x8] sm:$0xff] %vm203, 0.0
    %206 = vst.msk [vmem:[#allocation2 + $0x10] sm:$0xff] %vm203, 0.0
    %207 = vst.msk [vmem:[#allocation2 + $0x18] sm:$0xff] %vm203, 0.0
    // Predicated region
    $region10: #{tpu_custom_call.1} parent=1 // pred_check
      _
    $region11: #{tpu_custom_call.1} parent=1 // pred_check_branch
      %209 = sbr.rel (0) target = $region13
    $region12: #{tpu_custom_call.1} parent=1 // pred_region
      %211 = vsyncadd [#allocation3], 0
      %s212 = sshll.u32 [#allocation2], 4
      %s213 = int_to_ptr.vmem [resolvable:$true] %s212
      %s214 = sshll.u32 %s2, 4
      %s215 = int_to_ptr.hbm [resolvable:$true] %s214
      %220 = dma.vmem_to_hbm [thread:$0]  %s213, 512, %s215, [#allocation3], 128, 128, 8
    $region13: #{tpu_custom_call.1} parent=1 // pred_fallthru
      _
    // Predicated region
    $region14: #{tpu_custom_call.1} parent=1 // pred_check
      _
    $region15: #{tpu_custom_call.1} parent=1 // pred_check_branch
      %222 = sbr.rel (0) target = $region17
    $region16: #{tpu_custom_call.1} parent=1 // pred_region
      %224 = dma.done [#allocation3], 512
    $region17: #{tpu_custom_call.1} parent=1 // pred_fallthru
      _
    %225 = vsyncpa [#allocation3], 1

</llo_original>
